<compile_context>
chip_gen: v7x
topology: tpu7x:2x2x1
jax: 0.10.0
libtpu: 0.0.40
codegen_flags: <defaults>
</compile_context>

<pallas_src>
import functools

import jax
import jax.numpy as jnp
from jax.experimental import pallas as pl
from jax.experimental.pallas import tpu as pltpu


def _round_up(x: int, m: int) -> int:
    return (x + m - 1) // m * m


def _bert_embeddings_kernel(ids_ref, tts_ref, wtab_hbm, ttab_ref,
                            gamma_ref, beta_ref, o_ref, wbuf, sem, *, eps):
    # ids_ref:   [M_pad]     int32  SMEM (scalar prefetch) -- word ids
    # tts_ref:   [TM, 1]     int32  VMEM -- token-type ids for this tile
    # wtab_hbm:  [V, H]             HBM  -- word embedding table (no auto-DMA)
    # ttab_ref:  [3, H]             VMEM -- token-type table (resident)
    # gamma/beta_ref: [1, H]        VMEM -- LayerNorm affine params
    # o_ref:     [TM, H]            VMEM -- output tile
    # wbuf:      [2, TM, H]         VMEM scratch -- double-buffered gather dest
    # sem:       DMA semaphores [2]
    i = pl.program_id(0)
    n_tiles = pl.num_programs(0)
    tm, h = o_ref.shape

    def issue_row_gather(tile_idx, slot):
        base = tile_idx * tm

        @pl.loop(0, tm)
        def _(r):
            wid = ids_ref[base + r]
            pltpu.make_async_copy(wtab_hbm.at[wid], wbuf.at[slot, r],
                                  sem.at[slot]).start()

    # Prime the pipeline with the first tile's gather.
    @pl.when(i == 0)
    def _():
        issue_row_gather(0, 0)

    slot = i % 2

    # Kick off the next tile's gather into the other slot *before* blocking, so
    # its DMAs overlap this tile's wait + LayerNorm + store.
    @pl.when(i + 1 < n_tiles)
    def _():
        issue_row_gather(i + 1, 1 - slot)

    # Drain this tile's TM row copies (each wait matches one row-sized copy).
    @pl.loop(0, tm)
    def _(r):
        pltpu.make_async_copy(wtab_hbm.at[0], wbuf.at[slot, 0],
                              sem.at[slot]).wait()

    words = wbuf[slot].astype(jnp.float32)                       # (TM, H)

    # Token-type gather: only 3 rows -> two VPU selects.
    # TODO(synk): on v5e fold this into a (TM, 3) one-hot matmul if VALU-bound.
    tt = tts_ref[...]                                            # (TM, 1)
    ttab = ttab_ref[...].astype(jnp.float32)                     # (3, H)
    tte = jnp.where(tt == 1, ttab[1:2, :],
                    jnp.where(tt == 2, ttab[2:3, :], ttab[0:1, :]))  # (TM, H)

    x = words + tte

    # TF-style LayerNorm (eps inside the sqrt).
    u = jnp.mean(x, axis=-1, keepdims=True)
    xc = x - u
    var = jnp.mean(xc * xc, axis=-1, keepdims=True)
    y = xc * jax.lax.rsqrt(var + eps)

    # TODO(synk): dropout omitted (inference); training would build a keep mask
    # with pltpu.prng_seed + pltpu.prng_random_bits here.
    o_ref[...] = (gamma_ref[...].astype(jnp.float32) * y
                  + beta_ref[...].astype(jnp.float32)).astype(o_ref.dtype)


def bert_embeddings(input_ids, token_type_ids, word_emb, token_type_emb,
                    ln_weight, ln_bias, *, eps=1e-12, block_m=512):
    """Pallas implementation of BertEmbeddings.forward (inference).

    input_ids:         [...,] int (e.g. [B, S]); ids must be in [0, V)
    token_type_ids:    same shape (or None -> zeros); values in {0, 1, 2}
    word_emb:          [V, H] float
    token_type_emb:    [3, H] float
    ln_weight/ln_bias: [H]    float
    returns            [..., H]
    """
    if token_type_ids is None:
        token_type_ids = jnp.zeros_like(input_ids)

    lead = input_ids.shape
    v, h = word_emb.shape
    m = 1
    for d in lead:
        m *= d

    # Large row tiles (multiple of 8 sublanes); clamp for tiny M.
    tm = block_m if m > block_m else max(_round_up(m, 8), 8)
    m_pad = _round_up(m, tm)
    pad = m_pad - m

    # Padding rows get id 0 / type 0 (valid rows; sliced off at the end).
    ids_flat = jnp.pad(input_ids.reshape(m).astype(jnp.int32), (0, pad))
    tts2d = jnp.pad(token_type_ids.reshape(m, 1).astype(jnp.int32),
                    ((0, pad), (0, 0)))

    gamma2 = ln_weight.reshape(1, h)
    beta2 = ln_bias.reshape(1, h)

    grid = (m_pad // tm,)
    kernel = functools.partial(_bert_embeddings_kernel, eps=eps)

    tab_itemsize = jnp.dtype(word_emb.dtype).itemsize
    out_itemsize = tab_itemsize

    # VMEM budget: double-buffered gather scratch + double-buffered output tile
    # + small constants; generous headroom, well under v7x's 64 MiB.
    vmem_est = (2 * tm * h * tab_itemsize       # gather scratch
                + 2 * tm * h * out_itemsize     # output double buffer
                + 2 * tm * 4                    # token-type id tiles
                + 2 * 5 * h * 4)                # ttab + gamma + beta
    vmem_limit = int(min(64 << 20, max(32 << 20, vmem_est + (8 << 20))))

    cost = pl.CostEstimate(
        flops=10 * m_pad * h,                          # add + LayerNorm + affine
        transcendentals=m_pad,                         # one rsqrt per row
        bytes_accessed=(2 * m_pad * 4                  # word + token-type ids
                        + m_pad * h * tab_itemsize     # gathered table rows
                        + 5 * h * tab_itemsize         # ttab + gamma + beta
                        + m_pad * h * out_itemsize),   # output
    )

    out = pl.pallas_call(
        kernel,
        out_shape=jax.ShapeDtypeStruct((m_pad, h), word_emb.dtype),
        grid_spec=pltpu.PrefetchScalarGridSpec(
            num_scalar_prefetch=1,
            grid=grid,
            in_specs=[
                pl.BlockSpec((tm, 1), lambda i, ids: (i, 0)),   # token-type ids
                pl.BlockSpec(memory_space=pl.ANY),              # word table (HBM)
                pl.BlockSpec((3, h), lambda i, ids: (0, 0)),    # token-type table
                pl.BlockSpec((1, h), lambda i, ids: (0, 0)),    # LayerNorm gamma
                pl.BlockSpec((1, h), lambda i, ids: (0, 0)),    # LayerNorm beta
            ],
            out_specs=pl.BlockSpec((tm, h), lambda i, ids: (i, 0)),
            scratch_shapes=[
                pltpu.VMEM((2, tm, h), word_emb.dtype),         # gather buffer
                pltpu.SemaphoreType.DMA((2,)),                  # per-slot DMA sem
            ],
        ),
        compiler_params=pltpu.CompilerParams(
            dimension_semantics=("arbitrary",),   # sequential: manual double-buffer
            vmem_limit_bytes=vmem_limit,
        ),
        cost_estimate=cost,
    )(ids_flat, tts2d, word_emb, token_type_emb, gamma2, beta2)

    return out[:m].reshape(*lead, h)


def reference_bert_embeddings(input_ids, token_type_ids, word_emb,
                              token_type_emb, ln_weight, ln_bias, eps=1e-12):
    if token_type_ids is None:
        token_type_ids = jnp.zeros_like(input_ids)
    x = word_emb[input_ids] + token_type_emb[token_type_ids]
    u = x.mean(-1, keepdims=True)
    s = ((x - u) ** 2).mean(-1, keepdims=True)
    xn = (x - u) / jnp.sqrt(s + eps)
    return ln_weight * xn + ln_bias


if __name__ == "__main__":
    # Small shapes consistent with the module. hidden=128 keeps the output
    # lane-dense; vocab is no longer tied to any VMEM/one-hot limit.
    batch, seq, hidden, vocab = 2, 8, 128, 1000

    key = jax.random.PRNGKey(0)
    k_ids, k_tt, k_w, k_t, k_g, k_b = jax.random.split(key, 6)

    input_ids = jax.random.randint(k_ids, (batch, seq), 0, vocab, dtype=jnp.int32)
    token_type_ids = jax.random.randint(k_tt, (batch, seq), 0, 3, dtype=jnp.int32)

    # Deterministic parameter init (initializer_range = 0.02 style).
    word_emb = 0.02 * jax.random.normal(k_w, (vocab, hidden), dtype=jnp.float32)
    token_type_emb = 0.02 * jax.random.normal(k_t, (3, hidden), dtype=jnp.float32)
    ln_weight = 1.0 + 0.02 * jax.random.normal(k_g, (hidden,), dtype=jnp.float32)
    ln_bias = 0.02 * jax.random.normal(k_b, (hidden,), dtype=jnp.float32)

    out = bert_embeddings(input_ids, token_type_ids, word_emb, token_type_emb,
                          ln_weight, ln_bias)
    out = jax.block_until_ready(out)

    ref = reference_bert_embeddings(input_ids, token_type_ids, word_emb,
                                    token_type_emb, ln_weight, ln_bias)
    assert out.shape == (batch, seq, hidden)
    assert jnp.allclose(out, ref, atol=1e-4, rtol=1e-4)

    print("KERNEL_OK")
</pallas_src>

<mosaic_0001>
module attributes {stable_mosaic.version = 11 : i64} {
  func.func @_bert_embeddings_kernel(%arg0: i32, %arg1: memref<16xi32, #tpu.memory_space<smem>>, %arg2: memref<16x1xi32, #tpu.memory_space<vmem>>, %arg3: memref<1000x128xf32, #tpu.memory_space<any>>, %arg4: memref<3x128xf32, #tpu.memory_space<vmem>>, %arg5: memref<1x128xf32, #tpu.memory_space<vmem>>, %arg6: memref<1x128xf32, #tpu.memory_space<vmem>>, %arg7: memref<16x128xf32, #tpu.memory_space<vmem>>, %arg8: memref<2x16x128xf32, #tpu.memory_space<vmem>>, %arg9: memref<2x!tpu.dma_semaphore, #tpu.memory_space<semaphore_mem>>) attributes {dimension_semantics = [#tpu.dimension_semantics<arbitrary>], iteration_bounds = array<i64: 1>, scalar_prefetch = 1 : i64, scratch_operands = 2 : i64, tpu.core_type = #tpu.core_type<tc>, window_params = [{transform_indices = @transform_0, window_bounds = array<i64: 16, 1>}, {}, {pipeline_mode = #tpu.pipeline_mode<synchronous>, transform_indices = @transform_2, window_bounds = array<i64: 3, 128>}, {pipeline_mode = #tpu.pipeline_mode<synchronous>, transform_indices = @transform_3, window_bounds = array<i64: 1, 128>}, {pipeline_mode = #tpu.pipeline_mode<synchronous>, transform_indices = @transform_4, window_bounds = array<i64: 1, 128>}, {transform_indices = @transform_5, window_bounds = array<i64: 16, 128>}]} {
    %c0_i32 = arith.constant 0 : i32
    %0 = arith.cmpi eq, %arg0, %c0_i32 : i32
    %1 = arith.extui %0 : i1 to i32
    %c0_i32_0 = arith.constant 0 : i32
    %2 = arith.cmpi ne, %1, %c0_i32_0 : i32
    scf.if %2 {
      %c0_i32_27 = arith.constant 0 : i32
      %c16_i32_28 = arith.constant 16 : i32
      %66 = arith.addi %c0_i32_27, %c16_i32_28 : i32
      %c1_i32_29 = arith.constant 1 : i32
      scf.for %arg10 = %c0_i32_27 to %66 step %c1_i32_29  : i32 {
        %c1_i32_31 = arith.constant 1 : i32
        %67 = arith.muli %arg10, %c1_i32_31 : i32
        %c0_i32_32 = arith.constant 0 : i32
        %68 = arith.addi %c0_i32_32, %67 : i32
        %c0_i32_33 = arith.constant 0 : i32
        %69 = arith.addi %c0_i32_33, %68 : i32
        %70 = arith.index_cast %69 : i32 to index
        %71 = memref.load %arg1[%70] : memref<16xi32, #tpu.memory_space<smem>>
        %c0_i32_34 = arith.constant 0 : i32
        %c0_i32_35 = arith.constant 0 : i32
        %c0_i32_36 = arith.constant 0 : i32
        %72 = tpu.memref_slice %arg3[%71, %c0_i32_36] : memref<1000x128xf32, #tpu.memory_space<any>> -> memref<1x128xf32, #tpu.memory_space<any>>
        %73 = tpu.memref_squeeze %72 : memref<1x128xf32, #tpu.memory_space<any>> -> memref<128xf32, #tpu.memory_space<any>>
        %c0_i32_37 = arith.constant 0 : i32
        %74 = tpu.memref_slice %arg8[%c0_i32_34, %68, %c0_i32_37] : memref<2x16x128xf32, #tpu.memory_space<vmem>> -> memref<1x1x128xf32, #tpu.memory_space<vmem>>
        %75 = tpu.memref_squeeze %74 : memref<1x1x128xf32, #tpu.memory_space<vmem>> -> memref<128xf32, #tpu.memory_space<vmem>>
        %76 = tpu.memref_slice %arg9[%c0_i32_35] : memref<2x!tpu.dma_semaphore, #tpu.memory_space<semaphore_mem>> -> memref<1x!tpu.dma_semaphore, #tpu.memory_space<semaphore_mem>>
        %77 = tpu.memref_squeeze %76 : memref<1x!tpu.dma_semaphore, #tpu.memory_space<semaphore_mem>> -> memref<!tpu.dma_semaphore, #tpu.memory_space<semaphore_mem>>
        tpu.enqueue_dma source(%73 : memref<128xf32, #tpu.memory_space<any>>) target(%75 : memref<128xf32, #tpu.memory_space<vmem>>) target_semaphore(%77 : memref<!tpu.dma_semaphore, #tpu.memory_space<semaphore_mem>>)
      }
      %c16_i32_30 = arith.constant 16 : i32
    } else {
    }
    %c2_i32 = arith.constant 2 : i32
    %c0_i32_1 = arith.constant 0 : i32
    %3 = arith.cmpi eq, %c2_i32, %c0_i32_1 : i32
    %c1_i32 = arith.constant 1 : i32
    %4 = arith.select %3, %c1_i32, %c2_i32 : i32
    %5 = arith.remsi %arg0, %4 : i32
    %c0_i32_2 = arith.constant 0 : i32
    %6 = arith.cmpi ne, %5, %c0_i32_2 : i32
    %c0_i32_3 = arith.constant 0 : i32
    %7 = arith.cmpi slt, %5, %c0_i32_3 : i32
    %c0_i32_4 = arith.constant 0 : i32
    %8 = arith.cmpi slt, %4, %c0_i32_4 : i32
    %9 = arith.xori %7, %8 : i1
    %10 = arith.andi %9, %6 : i1
    %11 = arith.addi %5, %4 : i32
    %12 = arith.select %10, %11, %5 : i32
    %c1_i32_5 = arith.constant 1 : i32
    %13 = arith.addi %arg0, %c1_i32_5 : i32
    %c1_i32_6 = arith.constant 1 : i32
    %14 = arith.cmpi slt, %13, %c1_i32_6 : i32
    %15 = arith.extui %14 : i1 to i32
    %c0_i32_7 = arith.constant 0 : i32
    %16 = arith.cmpi ne, %15, %c0_i32_7 : i32
    scf.if %16 {
      %c1_i32_27 = arith.constant 1 : i32
      %66 = arith.addi %arg0, %c1_i32_27 : i32
      %c1_i32_28 = arith.constant 1 : i32
      %67 = arith.subi %c1_i32_28, %12 : i32
      %c16_i32_29 = arith.constant 16 : i32
      %68 = arith.muli %66, %c16_i32_29 : i32
      %c0_i32_30 = arith.constant 0 : i32
      %c16_i32_31 = arith.constant 16 : i32
      %69 = arith.addi %c0_i32_30, %c16_i32_31 : i32
      %c1_i32_32 = arith.constant 1 : i32
      scf.for %arg10 = %c0_i32_30 to %69 step %c1_i32_32  : i32 {
        %c1_i32_34 = arith.constant 1 : i32
        %70 = arith.muli %arg10, %c1_i32_34 : i32
        %c0_i32_35 = arith.constant 0 : i32
        %71 = arith.addi %c0_i32_35, %70 : i32
        %72 = arith.addi %68, %71 : i32
        %73 = arith.index_cast %72 : i32 to index
        %74 = memref.load %arg1[%73] : memref<16xi32, #tpu.memory_space<smem>>
        %c0_i32_36 = arith.constant 0 : i32
        %75 = tpu.memref_slice %arg3[%74, %c0_i32_36] : memref<1000x128xf32, #tpu.memory_space<any>> -> memref<1x128xf32, #tpu.memory_space<any>>
        %76 = tpu.memref_squeeze %75 : memref<1x128xf32, #tpu.memory_space<any>> -> memref<128xf32, #tpu.memory_space<any>>
        %c0_i32_37 = arith.constant 0 : i32
        %77 = tpu.memref_slice %arg8[%67, %71, %c0_i32_37] : memref<2x16x128xf32, #tpu.memory_space<vmem>> -> memref<1x1x128xf32, #tpu.memory_space<vmem>>
        %78 = tpu.memref_squeeze %77 : memref<1x1x128xf32, #tpu.memory_space<vmem>> -> memref<128xf32, #tpu.memory_space<vmem>>
        %79 = tpu.memref_slice %arg9[%67] : memref<2x!tpu.dma_semaphore, #tpu.memory_space<semaphore_mem>> -> memref<1x!tpu.dma_semaphore, #tpu.memory_space<semaphore_mem>>
        %80 = tpu.memref_squeeze %79 : memref<1x!tpu.dma_semaphore, #tpu.memory_space<semaphore_mem>> -> memref<!tpu.dma_semaphore, #tpu.memory_space<semaphore_mem>>
        tpu.enqueue_dma source(%76 : memref<128xf32, #tpu.memory_space<any>>) target(%78 : memref<128xf32, #tpu.memory_space<vmem>>) target_semaphore(%80 : memref<!tpu.dma_semaphore, #tpu.memory_space<semaphore_mem>>)
      }
      %c16_i32_33 = arith.constant 16 : i32
    } else {
    }
    %c0_i32_8 = arith.constant 0 : i32
    %c16_i32 = arith.constant 16 : i32
    %17 = arith.addi %c0_i32_8, %c16_i32 : i32
    %c1_i32_9 = arith.constant 1 : i32
    scf.for %arg10 = %c0_i32_8 to %17 step %c1_i32_9  : i32 {
      %c0_i32_27 = arith.constant 0 : i32
      %c0_i32_28 = arith.constant 0 : i32
      %c0_i32_29 = arith.constant 0 : i32
      %66 = tpu.memref_slice %arg3[%c0_i32_27, %c0_i32_29] : memref<1000x128xf32, #tpu.memory_space<any>> -> memref<1x128xf32, #tpu.memory_space<any>>
      %67 = tpu.memref_squeeze %66 : memref<1x128xf32, #tpu.memory_space<any>> -> memref<128xf32, #tpu.memory_space<any>>
      %c0_i32_30 = arith.constant 0 : i32
      %68 = tpu.memref_slice %arg8[%12, %c0_i32_28, %c0_i32_30] : memref<2x16x128xf32, #tpu.memory_space<vmem>> -> memref<1x1x128xf32, #tpu.memory_space<vmem>>
      %69 = tpu.memref_squeeze %68 : memref<1x1x128xf32, #tpu.memory_space<vmem>> -> memref<128xf32, #tpu.memory_space<vmem>>
      %70 = tpu.memref_slice %arg9[%12] : memref<2x!tpu.dma_semaphore, #tpu.memory_space<semaphore_mem>> -> memref<1x!tpu.dma_semaphore, #tpu.memory_space<semaphore_mem>>
      %71 = tpu.memref_squeeze %70 : memref<1x!tpu.dma_semaphore, #tpu.memory_space<semaphore_mem>> -> memref<!tpu.dma_semaphore, #tpu.memory_space<semaphore_mem>>
      tpu.wait_dma2 semaphore(%71 : memref<!tpu.dma_semaphore, #tpu.memory_space<semaphore_mem>>) src(%67 : memref<128xf32, #tpu.memory_space<any>>) dst(%69 : memref<128xf32, #tpu.memory_space<vmem>>)
    }
    %18 = arith.index_cast %12 : i32 to index
    %c0 = arith.constant 0 : index
    %c0_10 = arith.constant 0 : index
    %19 = vector.load %arg8[%18, %c0, %c0_10] : memref<2x16x128xf32, #tpu.memory_space<vmem>>, vector<1x16x128xf32>
    %20 = vector.shape_cast %19 : vector<1x16x128xf32> to vector<16x128xf32>
    %c0_11 = arith.constant 0 : index
    %c0_12 = arith.constant 0 : index
    %21 = vector.load %arg2[%c0_11, %c0_12] : memref<16x1xi32, #tpu.memory_space<vmem>>, vector<16x1xi32>
    %c0_13 = arith.constant 0 : index
    %c0_14 = arith.constant 0 : index
    %22 = vector.load %arg4[%c0_13, %c0_14] : memref<3x128xf32, #tpu.memory_space<vmem>>, vector<3x128xf32>
    %c1_i32_15 = arith.constant 1 : i32
    %23 = vector.broadcast %c1_i32_15 : i32 to vector<16x1xi32>
    %24 = arith.cmpi eq, %21, %23 : vector<16x1xi32>
    %25 = vector.extract_strided_slice %22 {offsets = [1, 0], sizes = [1, 128], strides = [1, 1]} : vector<3x128xf32> to vector<1x128xf32>
    %c2_i32_16 = arith.constant 2 : i32
    %26 = vector.broadcast %c2_i32_16 : i32 to vector<16x1xi32>
    %27 = arith.cmpi eq, %21, %26 : vector<16x1xi32>
    %28 = vector.extract_strided_slice %22 {offsets = [2, 0], sizes = [1, 128], strides = [1, 1]} : vector<3x128xf32> to vector<1x128xf32>
    %29 = vector.extract_strided_slice %22 {offsets = [0, 0], sizes = [1, 128], strides = [1, 1]} : vector<3x128xf32> to vector<1x128xf32>
    %30 = vector.shape_cast %27 : vector<16x1xi1> to vector<16x1xi1>
    %31 = vector.broadcast %30 : vector<16x1xi1> to vector<16x128xi1>
    %32 = vector.shape_cast %28 : vector<1x128xf32> to vector<1x128xf32>
    %33 = vector.broadcast %32 : vector<1x128xf32> to vector<16x128xf32>
    %34 = vector.shape_cast %29 : vector<1x128xf32> to vector<1x128xf32>
    %35 = vector.broadcast %34 : vector<1x128xf32> to vector<16x128xf32>
    %36 = arith.select %31, %33, %35 : vector<16x128xi1>, vector<16x128xf32>
    %37 = vector.shape_cast %24 : vector<16x1xi1> to vector<16x1xi1>
    %38 = vector.broadcast %37 : vector<16x1xi1> to vector<16x128xi1>
    %39 = vector.shape_cast %25 : vector<1x128xf32> to vector<1x128xf32>
    %40 = vector.broadcast %39 : vector<1x128xf32> to vector<16x128xf32>
    %41 = arith.select %38, %40, %36 : vector<16x128xi1>, vector<16x128xf32>
    %42 = arith.addf %20, %41 : vector<16x128xf32>
    %cst = arith.constant dense<0.000000e+00> : vector<16xf32>
    %43 = vector.multi_reduction <add>, %42, %cst [1] : vector<16x128xf32> to vector<16xf32>
    %44 = vector.shape_cast %43 : vector<16xf32> to vector<16x1xf32>
    %cst_17 = arith.constant 1.280000e+02 : f32
    %45 = vector.broadcast %cst_17 : f32 to vector<16x1xf32>
    %46 = arith.divf %44, %45 : vector<16x1xf32>
    %47 = vector.broadcast %46 : vector<16x1xf32> to vector<16x128xf32>
    %48 = arith.subf %42, %47 : vector<16x128xf32>
    %49 = arith.mulf %48, %48 : vector<16x128xf32>
    %cst_18 = arith.constant dense<0.000000e+00> : vector<16xf32>
    %50 = vector.multi_reduction <add>, %49, %cst_18 [1] : vector<16x128xf32> to vector<16xf32>
    %51 = vector.shape_cast %50 : vector<16xf32> to vector<16x1xf32>
    %cst_19 = arith.constant 1.280000e+02 : f32
    %52 = vector.broadcast %cst_19 : f32 to vector<16x1xf32>
    %53 = arith.divf %51, %52 : vector<16x1xf32>
    %cst_20 = arith.constant 9.99999996E-13 : f32
    %54 = vector.broadcast %cst_20 : f32 to vector<16x1xf32>
    %55 = arith.addf %53, %54 : vector<16x1xf32>
    %56 = math.rsqrt %55 : vector<16x1xf32>
    %57 = vector.broadcast %56 : vector<16x1xf32> to vector<16x128xf32>
    %58 = arith.mulf %48, %57 : vector<16x128xf32>
    %c0_21 = arith.constant 0 : index
    %c0_22 = arith.constant 0 : index
    %59 = vector.load %arg5[%c0_21, %c0_22] : memref<1x128xf32, #tpu.memory_space<vmem>>, vector<1x128xf32>
    %60 = vector.broadcast %59 : vector<1x128xf32> to vector<16x128xf32>
    %61 = arith.mulf %60, %58 : vector<16x128xf32>
    %c0_23 = arith.constant 0 : index
    %c0_24 = arith.constant 0 : index
    %62 = vector.load %arg6[%c0_23, %c0_24] : memref<1x128xf32, #tpu.memory_space<vmem>>, vector<1x128xf32>
    %63 = vector.broadcast %62 : vector<1x128xf32> to vector<16x128xf32>
    %64 = arith.addf %61, %63 : vector<16x128xf32>
    %c0_25 = arith.constant 0 : index
    %c0_26 = arith.constant 0 : index
    %65 = vector.load %arg7[%c0_25, %c0_26] : memref<16x128xf32, #tpu.memory_space<vmem>>, vector<16x128xf32>
    tpu.vector_store %arg7[%c0_25, %c0_26], %64 {strides = array<i32>} : memref<16x128xf32, #tpu.memory_space<vmem>>, vector<16x128xf32>,
    return
  }
  func.func @transform_0(%arg0: i32, %arg1: memref<16xi32, #tpu.memory_space<smem>>) -> (i32, i32) {
    %c0_i32 = arith.constant 0 : i32
    %c0_i32_0 = arith.constant 0 : i32
    return %arg0, %c0_i32 : i32, i32
  }
  func.func @transform_2(%arg0: i32, %arg1: memref<16xi32, #tpu.memory_space<smem>>) -> (i32, i32) {
    %c0_i32 = arith.constant 0 : i32
    %c0_i32_0 = arith.constant 0 : i32
    %c0_i32_1 = arith.constant 0 : i32
    return %c0_i32, %c0_i32_0 : i32, i32
  }
  func.func @transform_3(%arg0: i32, %arg1: memref<16xi32, #tpu.memory_space<smem>>) -> (i32, i32) {
    %c0_i32 = arith.constant 0 : i32
    %c0_i32_0 = arith.constant 0 : i32
    %c0_i32_1 = arith.constant 0 : i32
    return %c0_i32, %c0_i32_0 : i32, i32
  }
  func.func @transform_4(%arg0: i32, %arg1: memref<16xi32, #tpu.memory_space<smem>>) -> (i32, i32) {
    %c0_i32 = arith.constant 0 : i32
    %c0_i32_0 = arith.constant 0 : i32
    %c0_i32_1 = arith.constant 0 : i32
    return %c0_i32, %c0_i32_0 : i32, i32
  }
  func.func @transform_5(%arg0: i32, %arg1: memref<16xi32, #tpu.memory_space<smem>>) -> (i32, i32) {
    %c0_i32 = arith.constant 0 : i32
    %c0_i32_0 = arith.constant 0 : i32
    return %arg0, %c0_i32 : i32, i32
  }
}

</mosaic_0001>

<llo_original>
// kernel: tpu_custom_call.1
$region0: #{tpu_custom_call.1}
  #allocation0 [shape = 'u32[]', space=smem, size = 0x4, offset = 0x4, fixed_abs, tag = 'smem constant byte address 0x4 - core index']
  #allocation1 [shape = 'u32[144,128]{1,0:T(1,128)}', space=vmem, size = 0x12000, scoped, tag = 'internal scratch']
  #allocation2 [shape = 'f32[2,16,128]{2,1,0:T(8,128)}', space=vmem, size = 0x4000, scoped, tag = 'scratch operand']
  #allocation3 [shape = 's32[2]{0}', space=sflag, size = 0x8, scoped, tag = 'scratch operand']
  #allocation4 [shape = 's32[1]{0}', space=sflag, size = 0x4, scoped, tag = 'scoped memory for tpu_custom_call.1']
  #allocation5 [shape = 'u8[512]{0}', space=smem, size = 0x200, scoped, tag = 'prefetched SMEM operand 0']
  #allocation8 [shape = 's32[]', space=sflag, size = 0x4, offset = 0, fixed_abs, tag = 'sflag constant byte address 0x0 - dummy sync flag']
  #allocation9 [shape = 's32[]', space=sflag, size = 0x4, offset = 0, fixed_abs, tag = 'sflag constant byte address 0x0 - dummy sync flag']
  #allocation10 [shape = 'u32[]', space=smem, size = 0x4, offset = 0x44, fixed_abs, tag = 'smem constant byte address 0x44 - assertion arg 0']
  #allocation11 [shape = 'u32[]', space=smem, size = 0x4, offset = 0x48, fixed_abs, tag = 'smem constant byte address 0x48 - assertion arg 1']
  #allocation12 [shape = 's32[]', space=sflag, size = 0x4, offset = 0, fixed_abs, tag = 'sflag constant byte address 0x0 - dummy sync flag']
  #allocation13 [shape = 's32[]', space=sflag, size = 0x4, offset = 0, fixed_abs, tag = 'sflag constant byte address 0x0 - dummy sync flag']
  %s0 = inlined_call_operand.vmem [shape: s32[16], index: 0, kind: input, shape index: {}]
  %s1 = inlined_call_operand.vmem [shape: s32[16,1], index: 1, kind: input, shape index: {}]
  %s2 = inlined_call_operand.hbm [shape: f32[1000,128], index: 2, kind: input, shape index: {}]
  %s3 = inlined_call_operand.vmem [shape: f32[3,128], index: 3, kind: input, shape index: {}]
  %s4 = inlined_call_operand.vmem [shape: f32[1,128], index: 4, kind: input, shape index: {}]
  %s5 = inlined_call_operand.vmem [shape: f32[1,128], index: 5, kind: input, shape index: {}]
  %s6 = inlined_call_operand.hbm [shape: f32[16,128], index: 6, kind: output, shape index: {}]
  %s7 = sld [smem:[#allocation0]]
  $region63: #{tpu_custom_call.1} parent=0
    _
  %s9 = ssub.s32 1, %s7
  %s10 = scalar_select 0, %s9, %s7
  %s11 = sshll.u32 %s0, 4
  %s12 = int_to_ptr.vmem [resolvable:$true] %s11
  %14 = dma.vmem_to_smem %s12, 16, [#allocation5], [#allocation4]
  %15 = dma.done [#allocation4], 16
  %16 = sfence
  $region1: #{tpu_custom_call.1} parent=0
    #allocation6 [shape = 'u8[8192]{0}', space=vmem, size = 0x2000, scoped, tag = 'output window, operand 0, single buffered']
    #allocation7 [shape = 's32[1]{0}', space=sflag, size = 0x4, scoped, tag = 'scoped memory for tpu_custom_call.1']
    %17 = vsyncpa [#allocation7], 0
    // Predicated region
    $region2: #{tpu_custom_call.1} parent=1 // pred_check
      _
    $region3: #{tpu_custom_call.1} parent=1 // pred_check_branch
      %19 = sbr.rel (0) target = $region5
    $region4: #{tpu_custom_call.1} parent=1 // pred_region
      _
    $region5: #{tpu_custom_call.1} parent=1 // pred_fallthru
      _
    // Predicated region
    $region6: #{tpu_custom_call.1} parent=1 // pred_check
      _
    $region7: #{tpu_custom_call.1} parent=1 // pred_check_branch
      %21 = sbr.rel (0) target = $region9
    $region8: #{tpu_custom_call.1} parent=1 // pred_region
      _
    $region9: #{tpu_custom_call.1} parent=1 // pred_fallthru
      _
    // Predicated region
    $region10: #{tpu_custom_call.1} parent=1 // pred_check
      _
    $region11: #{tpu_custom_call.1} parent=1 // pred_check_branch
      %23 = sbr.rel (0) target = $region13
    $region12: #{tpu_custom_call.1} parent=1 // pred_region
      _
    $region13: #{tpu_custom_call.1} parent=1 // pred_fallthru
      _
    // Predicated region
    $region14: #{tpu_custom_call.1} parent=1 // pred_check
      _
    $region15: #{tpu_custom_call.1} parent=1 // pred_check_branch
      %25 = sbr.rel (0) target = $region17
    $region16: #{tpu_custom_call.1} parent=1 // pred_region
      _
    $region17: #{tpu_custom_call.1} parent=1 // pred_fallthru
      _
    %p26 = scmp.eq.s32.totalorder 0, 0
    // Predicated region
    $region18: #{tpu_custom_call.1} parent=1 // pred_check
      %p27 = pneg %p26
    $region19: #{tpu_custom_call.1} parent=1 // pred_check_branch
      %29 = sbr.rel (%p27) target = $region21
    $region20: #{tpu_custom_call.1} parent=1 // pred_region
      loop: start=0, step=1, limit=16
      $region22: #{tpu_custom_call.1} parent=20 // loop_pre_header
        _
      $region23: #{tpu_custom_call.1} parent=20 // loop_header
        %s31 = sphi 0, %s35
        %p32 = scmp.ge.s32.totalorder %s31, 16
      $region24: #{tpu_custom_call.1} parent=20 // loop_header_branch
        %34 = sbr.rel (%p32) target = $region28
      $region25: #{tpu_custom_call.1} parent=20 // loop_body
        %s36 = sld [smem:[#allocation5 + %s31]]
        %s37 = smul.addr %s36, 16
        %s38 = scalar_lea.hbm %s2, %s37
        %s39 = scalar_lea.vmem [#allocation2], %s31
        // Predicated region
        $region29: #{tpu_custom_call.1} parent=25 // pred_check
          _
        $region30: #{tpu_custom_call.1} parent=25 // pred_check_branch
          %41 = sbr.rel target = $region32
        $region31: #{tpu_custom_call.1} parent=25 // pred_region
          %42 = sst [smem:[#allocation10]] [#allocation9]
          %43 = sst [smem:[#allocation11]] [#allocation8]
        $region32: #{tpu_custom_call.1} parent=25 // pred_fallthru
          _
        %45 = shalt.err (0)
        %s47 = sshll.u32 %s39, 4
        %s48 = int_to_ptr.vmem [resolvable:$true] %s47
        %50 = dma.hbm_to_vmem [thread:$0]  %s38, 16, %s48, [#allocation3]
      $region26: #{tpu_custom_call.1} parent=20 // loop_footer
        %s35 = sadd.s32 1, %s31
      $region27: #{tpu_custom_call.1} parent=20 // loop_footer_branch
        %30 = sbr.rel target = $region23
      $region28: #{tpu_custom_call.1} parent=20 // loop_exit
        _
    $region21: #{tpu_custom_call.1} parent=1 // pred_fallthru
      _
    %s51 = ssub.s32 0, 0
    %s52 = ssub.s32 0, 0
    %p53 = scmp.ne.s32.totalorder 0, 0
    %p54 = scmp.lt.s32.totalorder 0, 0
    %p55 = pnand %p54, %p53
    %p56 = pneg %p55
    %s57 = sadd.s32 0, 2
    %s58 = scalar_select %p56, %s57, 0
    %s59 = sadd.s32 0, 1
    %p60 = scmp.lt.s32.totalorder %s59, 1
    // Predicated region
    $region33: #{tpu_custom_call.1} parent=1 // pred_check
      %p61 = pneg %p60
    $region34: #{tpu_custom_call.1} parent=1 // pred_check_branch
      %63 = sbr.rel (%p61) target = $region36
    $region35: #{tpu_custom_call.1} parent=1 // pred_region
      %s64 = ssub.s32 1, %s58
      %s65 = smul.u32 %s59, 16
      loop: start=0, step=1, limit=16
      $region37: #{tpu_custom_call.1} parent=35 // loop_pre_header
        _
      $region38: #{tpu_custom_call.1} parent=35 // loop_header
        %s67 = sphi 0, %s71
        %p68 = scmp.ge.s32.totalorder %s67, 16
      $region39: #{tpu_custom_call.1} parent=35 // loop_header_branch
        %70 = sbr.rel (%p68) target = $region43
      $region40: #{tpu_custom_call.1} parent=35 // loop_body
        %s72 = sadd.s32 %s65, %s67
        %s73 = sld [smem:[#allocation5 + %s72]]
        %s74 = smul.addr %s73, 16
        %s75 = scalar_lea.hbm %s2, %s74
        %s76 = smul.u32 %s64, 16
        %s77 = sadd.s32 %s67, %s76
        %s78 = scalar_lea.vmem [#allocation2], %s77
        %s79 = scalar_lea.sflag [#allocation3], %s64
        // Predicated region
        $region44: #{tpu_custom_call.1} parent=40 // pred_check
          _
        $region45: #{tpu_custom_call.1} parent=40 // pred_check_branch
          %81 = sbr.rel target = $region47
        $region46: #{tpu_custom_call.1} parent=40 // pred_region
          %82 = sst [smem:[#allocation10]] [#allocation13]
          %83 = sst [smem:[#allocation11]] [#allocation12]
        $region47: #{tpu_custom_call.1} parent=40 // pred_fallthru
          _
        %85 = shalt.err (0)
        %s87 = sshll.u32 %s78, 4
        %s88 = int_to_ptr.vmem [resolvable:$true] %s87
        %90 = dma.hbm_to_vmem [thread:$0]  %s75, 16, %s88, %s79
      $region41: #{tpu_custom_call.1} parent=35 // loop_footer
        %s71 = sadd.s32 1, %s67
      $region42: #{tpu_custom_call.1} parent=35 // loop_footer_branch
        %66 = sbr.rel target = $region38
      $region43: #{tpu_custom_call.1} parent=35 // loop_exit
        _
    $region36: #{tpu_custom_call.1} parent=1 // pred_fallthru
      _
    loop: start=0, step=1, limit=16
    $region48: #{tpu_custom_call.1} parent=1 // loop_pre_header
      _
    $region49: #{tpu_custom_call.1} parent=1 // loop_header
      %s92 = sphi 0, %s96
      %p93 = scmp.ge.s32.totalorder %s92, 16
    $region50: #{tpu_custom_call.1} parent=1 // loop_header_branch
      %95 = sbr.rel (%p93) target = $region54
    $region51: #{tpu_custom_call.1} parent=1 // loop_body
      %s97 = scalar_lea.sflag [#allocation3], %s58
      %99 = dma.done %s97, 16
    $region52: #{tpu_custom_call.1} parent=1 // loop_footer
      %s96 = sadd.s32 1, %s92
    $region53: #{tpu_custom_call.1} parent=1 // loop_footer_branch
      %91 = sbr.rel target = $region49
    $region54: #{tpu_custom_call.1} parent=1 // loop_exit
      _
    %s100 = smul.u32 %s58, 16
    %s101 = scalar_lea.vmem [#allocation2], %s100
    %v102 = vld [vmem:[%s101] sm:$0xff]
    %v103 = vld [vmem:[%s101 + $0x8] sm:$0xff]
    %v104 = vld [vmem:[%s1] sm:$0xff]
    %v105 = vld [vmem:[%s1 + $0x8] sm:$0xff]
    %v106 = vld [vmem:[%s3] sm:$0x7]
    %vm107 = vcmp.eq.s32.totalorder %v104, 1
    %vm108 = vcmp.eq.s32.totalorder %v105, 1
    %vm109 = vcmp.eq.s32.totalorder %v104, 2
    %vm110 = vcmp.eq.s32.totalorder %v105, 2
    %v111 = vsel %vm109, 1, 0
    %v112 = vsel %vm110, 1, 0
    %113 = vset.pattern.permute.xlu0 0
    %114 = vperm.xlu0 %113, %v111
    %v115 = vpop.permute.xlu0 %114
    %116 = vset.pattern.permute.xlu0 0
    %117 = vperm.xlu0 %116, %v112
    %v118 = vpop.permute.xlu0 %117
    %vm119 = vcmp.eq.s32.totalorder %v115, 1
    %vm120 = vcmp.eq.s32.totalorder %v118, 1
    %v121 = vlaneseq
    %v122 = vshrl.u32 %v121, 7
    %v123 = vsub.s32 2, %v122
    %v124 = vrot.slane %v106, %v123
    %v125 = vlaneseq
    %v126 = vshrl.u32 %v125, 7
    %v127 = vsub.s32 0, %v126
    %v128 = vrot.slane %v106, %v127
    %v129 = vsel %vm119, %v124, %v128
    %v130 = vsel %vm120, %v124, %v128
    %v131 = vsel %vm107, 1, 0
    %v132 = vsel %vm108, 1, 0
    %133 = vset.pattern.permute.xlu0 0
    %134 = vperm.xlu0 %133, %v131
    %v135 = vpop.permute.xlu0 %134
    %136 = vset.pattern.permute.xlu0 0
    %137 = vperm.xlu0 %136, %v132
    %v138 = vpop.permute.xlu0 %137
    %vm139 = vcmp.eq.s32.totalorder %v135, 1
    %vm140 = vcmp.eq.s32.totalorder %v138, 1
    %v141 = vlaneseq
    %v142 = vshrl.u32 %v141, 7
    %v143 = vsub.s32 1, %v142
    %v144 = vrot.slane %v106, %v143
    %v145 = vsel %vm139, %v144, %v129
    %v146 = vsel %vm140, %v144, %v130
    %v147 = vadd.f32 %v102, %v145
    %v148 = vadd.f32 %v103, %v146
    %149 = vadd.xlane.f32.xlu0 %v147
    %v150 = vpop.xlane.xlu0 %149
    %151 = vadd.xlane.f32.xlu0 %v148
    %v152 = vpop.xlane.xlu0 %151
    %v153 = vrcp.pop 128.0
    %v154 = vmul.f32 %v150, %v153
    %v155 = vmul.f32 %v152, %v153
    %v156 = vsub.f32 %v147, %v154
    %v157 = vsub.f32 %v148, %v155
    %v158 = vmul.f32 %v156, %v156
    %v159 = vmul.f32 %v157, %v157
    %160 = vadd.xlane.f32.xlu0 %v158
    %v161 = vpop.xlane.xlu0 %160
    %162 = vadd.xlane.f32.xlu0 %v159
    %v163 = vpop.xlane.xlu0 %162
    %v164 = vmul.f32 %v161, %v153
    %v165 = vmul.f32 %v163, %v153
    %v166 = vadd.f32 %v164, 1e-12
    %v167 = vadd.f32 %v165, 1e-12
    %v168 = vrsqrt.pop %v166
    %v169 = vrsqrt.pop %v167
    %v170 = vmul.f32 %v156, %v168
    %v171 = vmul.f32 %v157, %v169
    %v172 = vld [vmem:[%s4] sm:$0x1]
    %v174 = vlaneseq
    %v175 = vshrl.u32 %v174, 7
    %v176 = vsub.s32 0, %v175
    %v177 = vrot.slane %v172, %v176
    %v179 = vmul.f32 %v177, %v170
    %v180 = vmul.f32 %v177, %v171
    %v181 = vld [vmem:[%s5] sm:$0x1]
    %v183 = vlaneseq
    %v184 = vshrl.u32 %v183, 7
    %v185 = vsub.s32 0, %v184
    %v186 = vrot.slane %v181, %v185
    %v188 = vadd.f32 %v179, %v186
    %v189 = vadd.f32 %v180, %v186
    %190 = vst [vmem:[#allocation6] sm:$0xff] %v188
    %191 = vst [vmem:[#allocation6 + $0x8] sm:$0xff] %v189
    // Predicated region
    $region55: #{tpu_custom_call.1} parent=1 // pred_check
      _
    $region56: #{tpu_custom_call.1} parent=1 // pred_check_branch
      %193 = sbr.rel (0) target = $region58
    $region57: #{tpu_custom_call.1} parent=1 // pred_region
      %s195 = ssub.s32 256, 256
      %196 = vsyncadd [#allocation7], %s195
      %s197 = sshll.u32 [#allocation6], 4
      %s198 = int_to_ptr.vmem [resolvable:$true] %s197
      %203 = dma.vmem_to_hbm [thread:$0]  %s198, 256, %s6, [#allocation7], 128, 128, 8
    $region58: #{tpu_custom_call.1} parent=1 // pred_fallthru
      _
    // Predicated region
    $region59: #{tpu_custom_call.1} parent=1 // pred_check
      _
    $region60: #{tpu_custom_call.1} parent=1 // pred_check_branch
      %205 = sbr.rel (0) target = $region62
    $region61: #{tpu_custom_call.1} parent=1 // pred_region
      %206 = dma.done [#allocation7], 256
    $region62: #{tpu_custom_call.1} parent=1 // pred_fallthru
      _
    %207 = vsyncpa [#allocation7], 1
  %208 = vsyncmov [#allocation3]
  %s209 = vpop.sfrf %208
  %p210 = scmp.eq.s32.totalorder %s209, 0
  %p211 = pneg %p210
  %213 = shalt.err (%p211)
  %s214 = scalar_lea.sflag [#allocation3], 1
  %215 = vsyncmov %s214
  %s216 = vpop.sfrf %215
  %p217 = scmp.eq.s32.totalorder %s216, 0
  %p218 = pneg %p217
  %220 = shalt.err (%p218)

</llo_original>
